<compile_context>
chip_gen: v5e
topology: v5e:2x2
jax: 0.10.0
libtpu: 0.0.40
codegen_flags: <defaults>
</compile_context>

<pallas_src>
import functools

import jax
import jax.numpy as jnp
from jax import lax
from jax.experimental import pallas as pl
from jax.experimental.pallas import tpu as pltpu

_LOG_2PI = 1.8378770664093453  # log(2*pi)


def _mog_loss_kernel(yhat_ref, y_ref, out_ref, *, log_scale_min, T, t_tile):
    # yhat_ref : (1, 3, K, Tt)  -- [logit | means | log_scales] on the size-3 axis
    # y_ref    : (1, 1, Tt)
    # out_ref  : (1, 1, 1, 128) -- per-(batch, time-tile) partial loss sum (lane splat)
    logit = yhat_ref[0, 0].astype(jnp.float32)                       # (K, Tt)
    means = yhat_ref[0, 1].astype(jnp.float32)                       # (K, Tt)
    log_scales = jnp.maximum(yhat_ref[0, 2].astype(jnp.float32),
                             log_scale_min)                          # (K, Tt)
    y = y_ref[0].astype(jnp.float32)                                 # (1, Tt) sublane-bcast

    # s_k = log N(y; mean_k, exp(ls_k)) + logit_k, constants folded:
    #   s = logit - ls - 0.5*log(2*pi) - 0.5 * (y - mean)^2 * exp(-2*ls)
    inv_var = jnp.exp(-2.0 * log_scales)                             # EUP
    centered = y - means
    s = (logit - log_scales - 0.5 * _LOG_2PI) \
        - 0.5 * (centered * centered) * inv_var

    # loss = logsumexp(logit) - logsumexp(s)   (log_softmax folded in)
    m_l = jnp.max(logit, axis=0, keepdims=True)                      # (1, Tt)
    log_sum_l = jnp.log(jnp.sum(jnp.exp(logit - m_l), axis=0, keepdims=True))
    if log_scale_min > -60.0:
        # Shared shift: s <= m_l + (-log_scale_min - 0.5*log(2*pi)), so
        # exp(s - m_l) cannot overflow; saves a second sublane max pass and the
        # m_l terms cancel in the difference.
        log_sum_s = jnp.log(jnp.sum(jnp.exp(s - m_l), axis=0, keepdims=True))
        loss = log_sum_l - log_sum_s                                 # (1, Tt)
    else:
        m_s = jnp.max(s, axis=0, keepdims=True)
        log_sum_s = jnp.log(jnp.sum(jnp.exp(s - m_s), axis=0, keepdims=True))
        loss = (m_l + log_sum_l) - (m_s + log_sum_s)

    # Mask the ragged tail lanes of the last time tile (unspecified data there),
    # then emit this tile's partial sum -> fused mean, no (B,1,T) writeback.
    t = pl.program_id(1)
    lane = lax.broadcasted_iota(jnp.int32, (1, t_tile), 1)
    valid = lane < (T - t * t_tile)
    partial = jnp.sum(jnp.where(valid, loss, 0.0), axis=1, keepdims=True)  # (1,1)
    out_ref[0, 0] = jnp.broadcast_to(partial, (1, 128))


def _choose_t_tile(B, T, t_tile_max, min_grid_steps):
    """Pick a lane tile: big (HBM roofline) but with enough grid steps for v7x."""
    if T <= t_tile_max:
        t_tile = T                      # single full-extent tile (always legal)
    else:
        t_tile = t_tile_max             # multiple of 128
    # Shrink for grid occupancy (v7x has 2 TensorCores; aim for >= min_grid_steps
    # steps), but never below 512 lanes (per-step overhead amortization).
    while B * pl.cdiv(T, t_tile) < min_grid_steps and t_tile > 512:
        new_t = max(512, ((t_tile // 2 + 127) // 128) * 128)
        if new_t == t_tile:
            break
        t_tile = new_t
    return t_tile


def mixture_gaussian_loss(y_hat, y, log_scale_min=-7.0, *, t_tile_max=8192,
                          min_grid_steps=8):
    """y_hat: (B, C, T) float/bf16, y: (B, T, 1) -> scalar mean loss (f32)."""
    B, C, T = y_hat.shape
    # TODO(synk): the C == 2 single-Gaussian parameterization path of
    # mix_gaussian_loss is not implemented; only the mixture (C = 3*nr_mix) path.
    assert C % 3 == 0, "expected C = 3 * nr_mix"
    nr_mix = C // 3

    # Metadata-only reshapes; inputs are streamed in their native dtype
    # (keep bf16 in HBM if the producer emits bf16 -- upcast happens in-kernel).
    yh4 = y_hat.reshape(B, 3, nr_mix, T)
    y3 = y.reshape(B, 1, T)

    t_tile_max = max(128, (t_tile_max // 128) * 128)
    t_tile = _choose_t_tile(B, T, t_tile_max, min_grid_steps)
    n_t = pl.cdiv(T, t_tile)
    grid = (B, n_t)

    kernel = functools.partial(_mog_loss_kernel, log_scale_min=log_scale_min,
                               T=T, t_tile=t_tile)

    partials = pl.pallas_call(
        kernel,
        out_shape=jax.ShapeDtypeStruct((B, n_t, 1, 128), jnp.float32),
        grid=grid,
        in_specs=[
            pl.BlockSpec((1, 3, nr_mix, t_tile), lambda b, t: (b, 0, 0, t)),
            pl.BlockSpec((1, 1, t_tile), lambda b, t: (b, 0, t)),
        ],
        out_specs=pl.BlockSpec((1, 1, 1, 128), lambda b, t: (b, t, 0, 0)),
        compiler_params=pltpu.CompilerParams(
            dimension_semantics=("parallel", "parallel")),
    )(yh4, y3)

    # Tiny epilogue: sum of per-(b, tile) partials / (B*T) == mean over (B,T,1).
    return jnp.sum(partials[:, :, 0, 0]) / (B * T)


def _reference(y_hat, y, log_scale_min=-7.0):
    """Pure-JAX reference mirroring r9y9 wavenet_vocoder mix_gaussian_loss."""
    B, C, T = y_hat.shape
    nr_mix = C // 3
    yh = jnp.transpose(y_hat, (0, 2, 1))
    logit = yh[:, :, :nr_mix]
    means = yh[:, :, nr_mix:2 * nr_mix]
    log_scales = jnp.maximum(yh[:, :, 2 * nr_mix:3 * nr_mix], log_scale_min)
    centered = y - means
    log_probs = (-0.5 * (centered * jnp.exp(-log_scales)) ** 2
                 - log_scales - 0.5 * _LOG_2PI)
    log_probs = log_probs + jax.nn.log_softmax(logit, axis=-1)
    losses = -jax.scipy.special.logsumexp(log_probs, axis=-1)[..., None]
    return jnp.mean(losses)


if __name__ == "__main__":
    key = jax.random.PRNGKey(0)

    def _case(k, B, nr_mix, T, dtype, **kw):
        k1, k2 = jax.random.split(k)
        y_hat = jax.random.normal(k1, (B, 3 * nr_mix, T),
                                  dtype=jnp.float32).astype(dtype)
        target = jax.random.uniform(k2, (B, T, 1), dtype=jnp.float32,
                                    minval=-1.0, maxval=1.0).astype(dtype)
        out = jax.block_until_ready(mixture_gaussian_loss(y_hat, target, **kw))
        ref = _reference(y_hat.astype(jnp.float32), target.astype(jnp.float32))
        assert jnp.allclose(out, ref, rtol=1e-4, atol=1e-4), (dtype, out, ref)

    k1, k2, k3 = jax.random.split(key, 3)
    # Tiny shape (single partial tile).
    _case(k1, B=2, nr_mix=4, T=16, dtype=jnp.float32)
    # Ragged multi-tile path (T not a multiple of the tile) with tail masking.
    _case(k2, B=2, nr_mix=5, T=300, dtype=jnp.float32, t_tile_max=128)
    # bf16 HBM stream (in-kernel upcast).
    _case(k3, B=2, nr_mix=4, T=16, dtype=jnp.bfloat16)

    print("KERNEL_OK")
</pallas_src>

<mosaic_0001>
module attributes {stable_mosaic.version = 11 : i64} {
  func.func @_mog_loss_kernel(%arg0: i32, %arg1: i32, %arg2: memref<1x3x4x16xf32, #tpu.memory_space<vmem>>, %arg3: memref<1x1x16xf32, #tpu.memory_space<vmem>>, %arg4: memref<1x1x1x128xf32, #tpu.memory_space<vmem>>) attributes {dimension_semantics = [#tpu.dimension_semantics<parallel>, #tpu.dimension_semantics<parallel>], iteration_bounds = array<i64: 2, 1>, scalar_prefetch = 0 : i64, scratch_operands = 0 : i64, tpu.core_type = #tpu.core_type<tc>, window_params = [{transform_indices = @transform_0, window_bounds = array<i64: 1, 3, 4, 16>}, {transform_indices = @transform_1, window_bounds = array<i64: 1, 1, 16>}, {transform_indices = @transform_2, window_bounds = array<i64: 1, 1, 1, 128>}]} {
    %c0 = arith.constant 0 : index
    %c0_0 = arith.constant 0 : index
    %c0_1 = arith.constant 0 : index
    %c0_2 = arith.constant 0 : index
    %0 = vector.load %arg2[%c0, %c0_0, %c0_1, %c0_2] : memref<1x3x4x16xf32, #tpu.memory_space<vmem>>, vector<1x1x4x16xf32>
    %1 = vector.shape_cast %0 : vector<1x1x4x16xf32> to vector<4x16xf32>
    %c0_3 = arith.constant 0 : index
    %c1 = arith.constant 1 : index
    %c0_4 = arith.constant 0 : index
    %c0_5 = arith.constant 0 : index
    %2 = vector.load %arg2[%c0_3, %c1, %c0_4, %c0_5] : memref<1x3x4x16xf32, #tpu.memory_space<vmem>>, vector<1x1x4x16xf32>
    %3 = vector.shape_cast %2 : vector<1x1x4x16xf32> to vector<4x16xf32>
    %c0_6 = arith.constant 0 : index
    %c2 = arith.constant 2 : index
    %c0_7 = arith.constant 0 : index
    %c0_8 = arith.constant 0 : index
    %4 = vector.load %arg2[%c0_6, %c2, %c0_7, %c0_8] : memref<1x3x4x16xf32, #tpu.memory_space<vmem>>, vector<1x1x4x16xf32>
    %5 = vector.shape_cast %4 : vector<1x1x4x16xf32> to vector<4x16xf32>
    %cst = arith.constant -7.000000e+00 : f32
    %6 = vector.broadcast %cst : f32 to vector<4x16xf32>
    %7 = arith.maximumf %5, %6 : vector<4x16xf32>
    %c0_9 = arith.constant 0 : index
    %c0_10 = arith.constant 0 : index
    %c0_11 = arith.constant 0 : index
    %8 = vector.load %arg3[%c0_9, %c0_10, %c0_11] : memref<1x1x16xf32, #tpu.memory_space<vmem>>, vector<1x1x16xf32>
    %9 = vector.shape_cast %8 : vector<1x1x16xf32> to vector<1x16xf32>
    %cst_12 = arith.constant -2.000000e+00 : f32
    %10 = vector.broadcast %cst_12 : f32 to vector<4x16xf32>
    %11 = arith.mulf %10, %7 : vector<4x16xf32>
    %12 = math.exp %11 : vector<4x16xf32>
    %13 = vector.broadcast %9 : vector<1x16xf32> to vector<4x16xf32>
    %14 = arith.subf %13, %3 : vector<4x16xf32>
    %15 = arith.subf %1, %7 : vector<4x16xf32>
    %cst_13 = arith.constant 0.918938517 : f32
    %16 = vector.broadcast %cst_13 : f32 to vector<4x16xf32>
    %17 = arith.subf %15, %16 : vector<4x16xf32>
    %18 = arith.mulf %14, %14 : vector<4x16xf32>
    %cst_14 = arith.constant 5.000000e-01 : f32
    %19 = vector.broadcast %cst_14 : f32 to vector<4x16xf32>
    %20 = arith.mulf %19, %18 : vector<4x16xf32>
    %21 = arith.mulf %20, %12 : vector<4x16xf32>
    %22 = arith.subf %17, %21 : vector<4x16xf32>
    %cst_15 = arith.constant dense<0xFF800000> : vector<16xf32>
    %23 = vector.multi_reduction <maximumf>, %1, %cst_15 [0] : vector<4x16xf32> to vector<16xf32>
    %24 = vector.shape_cast %23 : vector<16xf32> to vector<1x16xf32>
    %25 = vector.broadcast %24 : vector<1x16xf32> to vector<4x16xf32>
    %26 = arith.subf %1, %25 : vector<4x16xf32>
    %27 = math.exp %26 : vector<4x16xf32>
    %cst_16 = arith.constant dense<0.000000e+00> : vector<16xf32>
    %28 = vector.multi_reduction <add>, %27, %cst_16 [0] : vector<4x16xf32> to vector<16xf32>
    %29 = vector.shape_cast %28 : vector<16xf32> to vector<1x16xf32>
    %30 = math.log %29 : vector<1x16xf32>
    %31 = vector.broadcast %24 : vector<1x16xf32> to vector<4x16xf32>
    %32 = arith.subf %22, %31 : vector<4x16xf32>
    %33 = math.exp %32 : vector<4x16xf32>
    %cst_17 = arith.constant dense<0.000000e+00> : vector<16xf32>
    %34 = vector.multi_reduction <add>, %33, %cst_17 [0] : vector<4x16xf32> to vector<16xf32>
    %35 = vector.shape_cast %34 : vector<16xf32> to vector<1x16xf32>
    %36 = math.log %35 : vector<1x16xf32>
    %37 = arith.subf %30, %36 : vector<1x16xf32>
    %38 = tpu.iota {dimensions = array<i32: 1>} : vector<1x16xi32>
    %c16_i32 = arith.constant 16 : i32
    %39 = arith.muli %arg1, %c16_i32 : i32
    %c16_i32_18 = arith.constant 16 : i32
    %40 = arith.subi %c16_i32_18, %39 : i32
    %41 = vector.broadcast %40 : i32 to vector<1x16xi32>
    %42 = arith.cmpi slt, %38, %41 : vector<1x16xi32>
    %cst_19 = arith.constant 0.000000e+00 : f32
    %43 = vector.broadcast %cst_19 : f32 to vector<1x16xf32>
    %44 = arith.select %42, %37, %43 : vector<1x16xi1>, vector<1x16xf32>
    %cst_20 = arith.constant dense<0.000000e+00> : vector<1xf32>
    %45 = vector.multi_reduction <add>, %44, %cst_20 [1] : vector<1x16xf32> to vector<1xf32>
    %46 = vector.shape_cast %45 : vector<1xf32> to vector<1x1xf32>
    %47 = vector.shape_cast %46 : vector<1x1xf32> to vector<1x1xf32>
    %48 = vector.broadcast %47 : vector<1x1xf32> to vector<1x128xf32>
    %c0_21 = arith.constant 0 : index
    %c0_22 = arith.constant 0 : index
    %c0_23 = arith.constant 0 : index
    %c0_24 = arith.constant 0 : index
    %49 = vector.load %arg4[%c0_21, %c0_22, %c0_23, %c0_24] : memref<1x1x1x128xf32, #tpu.memory_space<vmem>>, vector<1x1x1x128xf32>
    %50 = vector.shape_cast %49 : vector<1x1x1x128xf32> to vector<1x128xf32>
    %51 = vector.shape_cast %48 : vector<1x128xf32> to vector<1x1x1x128xf32>
    tpu.vector_store %arg4[%c0_21, %c0_22, %c0_23, %c0_24], %51 {strides = array<i32>} : memref<1x1x1x128xf32, #tpu.memory_space<vmem>>, vector<1x1x1x128xf32>,
    return
  }
  func.func @transform_0(%arg0: i32, %arg1: i32) -> (i32, i32, i32, i32) {
    %c0_i32 = arith.constant 0 : i32
    %c0_i32_0 = arith.constant 0 : i32
    %c0_i32_1 = arith.constant 0 : i32
    return %arg0, %c0_i32, %c0_i32_0, %arg1 : i32, i32, i32, i32
  }
  func.func @transform_1(%arg0: i32, %arg1: i32) -> (i32, i32, i32) {
    %c0_i32 = arith.constant 0 : i32
    %c0_i32_0 = arith.constant 0 : i32
    return %arg0, %c0_i32, %arg1 : i32, i32, i32
  }
  func.func @transform_2(%arg0: i32, %arg1: i32) -> (i32, i32, i32, i32) {
    %c0_i32 = arith.constant 0 : i32
    %c0_i32_0 = arith.constant 0 : i32
    %c0_i32_1 = arith.constant 0 : i32
    return %arg0, %arg1, %c0_i32, %c0_i32_0 : i32, i32, i32, i32
  }
}

</mosaic_0001>

<llo_original>
// kernel: tpu_custom_call.1
$region0: #{tpu_custom_call.1}
  #allocation0 [shape = 'u32[]', space=smem, size = 0x4, offset = 0x4, fixed_abs, tag = 'smem constant byte address 0x4 - core index']
  #allocation1 [shape = 'u32[72,128]{1,0:T(1,128)}', space=vmem, size = 0x9000, scoped, tag = 'internal scratch']
  %s0 = inlined_call_operand.hbm [shape: f32[2,3,4,16], index: 0, kind: input, shape index: {}]
  %s1 = inlined_call_operand.hbm [shape: f32[2,1,16], index: 1, kind: input, shape index: {}]
  %s2 = inlined_call_operand.hbm [shape: f32[2,1,1,128], index: 2, kind: output, shape index: {}]
  %s3 = sld [smem:[#allocation0]]
  $region49: #{tpu_custom_call.1} parent=0
    _
  %s5 = ssub.s32 1, %s3
  %s6 = scalar_select 0, %s5, %s3
  $region1: #{tpu_custom_call.1} parent=0
    #allocation2 [shape = 'u8[12288]{0}', space=vmem, size = 0x3000, scoped, tag = 'input window, operand 0']
    #allocation3 [shape = 's32[2]{0}', space=sflag, size = 0x8, scoped, tag = 'scoped memory for tpu_custom_call.1']
    #allocation4 [shape = 's32[2]{0}', space=sflag, size = 0x8, scoped, tag = 'scoped memory for tpu_custom_call.1']
    #allocation5 [shape = 'u8[1024]{0}', space=vmem, size = 0x400, scoped, tag = 'input window, operand 1']
    #allocation6 [shape = 's32[2]{0}', space=sflag, size = 0x8, scoped, tag = 'scoped memory for tpu_custom_call.1']
    #allocation7 [shape = 'u8[1024]{0}', space=vmem, size = 0x400, scoped, tag = 'output window, operand 0']
    %7 = vsyncpa [#allocation3], 0
    %s8 = scalar_lea.sflag [#allocation3], 1
    %9 = vsyncpa %s8, 0
    %10 = vsyncpa [#allocation6], 0
    %s11 = scalar_lea.sflag [#allocation6], 1
    %12 = vsyncpa %s11, 0
    %13 = vsyncpa [#allocation4], 0
    %s14 = scalar_lea.sflag [#allocation4], 1
    %15 = vsyncpa %s14, 0
    loop: start=0, step=1, limit=4
    $region2: #{tpu_custom_call.1} parent=1 // loop_pre_header
      _
    $region3: #{tpu_custom_call.1} parent=1 // loop_header
      %s17 = sphi 0, %s21
      %p18 = scmp.ge.s32.totalorder %s17, 4
      %s24 = sphi 0, %s36
      %s25 = sphi 0, %s32
      %s26 = sphi 0, %s24
      %s27 = sphi 0, %s25
      %s28 = sphi 0, %s26
      %s29 = sphi 0, %s27
      %s41 = sphi 0, %s43
      %s44 = sphi 0, %s41
      %s45 = sphi 0, %s44
      %s61 = sphi 0, %s45
      %s69 = sphi 0, %s71
      %s72 = sphi 0, %s69
      %s73 = sphi 0, %s72
      %s89 = sphi 0, %s73
      %s97 = sphi 0, %s99
      %s100 = sphi 0, %s97
      %s101 = sphi 0, %s100
      %s117 = sphi 0, %s101
    $region4: #{tpu_custom_call.1} parent=1 // loop_header_branch
      %20 = sbr.rel (%p18) target = $region8
    $region5: #{tpu_custom_call.1} parent=1 // loop_body
      %s22 = ssub.s32 %s17, 1
      %s23 = ssub.s32 %s17, 2
      %s30 = sadd.s32 1, %s25
      %p31 = scmp.ge.s32.totalorder %s30, 1
      %s32 = scalar_select %p31, 0, %s30
      %s33 = sadd.s32 1, %s24
      %s34 = scalar_select %p31, %s33, %s24
      %p35 = scmp.ge.s32.totalorder %s34, 2
      %s36 = scalar_select %p35, 0, %s34
      %s37 = ssub.s32 %s24, %s36
      %s38 = ssub.s32 %s25, %s32
      %s39 = sor.u32 %s37, %s38
      %p40 = scmp.eq.s32.totalorder %s39, 0
      %s42 = sadd.s32 %s41, 1
      %s43 = scalar_select %p40, %s41, %s42
      %p46 = pneg %p40
      %p47 = scmp.eq.s32.totalorder %s17, 1
      %p48 = por %p46, %p47
      %p49 = scmp.ne.s32.totalorder %s41, %s44
      %p50 = scmp.eq.s32.totalorder %s17, 0
      %p51 = por %p49, %p50
      %p52 = scmp.ne.s32.totalorder %s41, %s44
      %p53 = scmp.eq.s32.totalorder %s22, 1
      %p54 = por %p52, %p53
      %p55 = scmp.ne.s32.totalorder %s44, %s45
      %p56 = scmp.eq.s32.totalorder %s22, 0
      %p57 = por %p55, %p56
      %p58 = scmp.ne.s32.totalorder %s44, %s45
      %p59 = scmp.eq.s32.totalorder %s23, 1
      %p60 = por %p58, %p59
      %p62 = scmp.ne.s32.totalorder %s45, %s61
      %p63 = scmp.eq.s32.totalorder %s23, 0
      %p64 = por %p62, %p63
      %s65 = ssub.s32 %s24, %s36
      %s66 = ssub.s32 %s25, %s32
      %s67 = sor.u32 %s65, %s66
      %p68 = scmp.eq.s32.totalorder %s67, 0
      %s70 = sadd.s32 %s69, 1
      %s71 = scalar_select %p68, %s69, %s70
      %p74 = pneg %p68
      %p75 = scmp.eq.s32.totalorder %s17, 1
      %p76 = por %p74, %p75
      %p77 = scmp.ne.s32.totalorder %s69, %s72
      %p78 = scmp.eq.s32.totalorder %s17, 0
      %p79 = por %p77, %p78
      %p80 = scmp.ne.s32.totalorder %s69, %s72
      %p81 = scmp.eq.s32.totalorder %s22, 1
      %p82 = por %p80, %p81
      %p83 = scmp.ne.s32.totalorder %s72, %s73
      %p84 = scmp.eq.s32.totalorder %s22, 0
      %p85 = por %p83, %p84
      %p86 = scmp.ne.s32.totalorder %s72, %s73
      %p87 = scmp.eq.s32.totalorder %s23, 1
      %p88 = por %p86, %p87
      %p90 = scmp.ne.s32.totalorder %s73, %s89
      %p91 = scmp.eq.s32.totalorder %s23, 0
      %p92 = por %p90, %p91
      %s93 = ssub.s32 %s24, %s36
      %s94 = ssub.s32 %s25, %s32
      %s95 = sor.u32 %s93, %s94
      %p96 = scmp.eq.s32.totalorder %s95, 0
      %s98 = sadd.s32 %s97, 1
      %s99 = scalar_select %p96, %s97, %s98
      %p102 = pneg %p96
      %p103 = scmp.eq.s32.totalorder %s17, 1
      %p104 = por %p102, %p103
      %p105 = scmp.ne.s32.totalorder %s97, %s100
      %p106 = scmp.eq.s32.totalorder %s17, 0
      %p107 = por %p105, %p106
      %p108 = scmp.ne.s32.totalorder %s97, %s100
      %p109 = scmp.eq.s32.totalorder %s22, 1
      %p110 = por %p108, %p109
      %p111 = scmp.ne.s32.totalorder %s100, %s101
      %p112 = scmp.eq.s32.totalorder %s22, 0
      %p113 = por %p111, %p112
      %p114 = scmp.ne.s32.totalorder %s100, %s101
      %p115 = scmp.eq.s32.totalorder %s23, 1
      %p116 = por %p114, %p115
      %p118 = scmp.ne.s32.totalorder %s101, %s117
      %p119 = scmp.eq.s32.totalorder %s23, 0
      %p120 = por %p118, %p119
      %p121 = scmp.le.s32.totalorder 1, %s17
      %p122 = scmp.lt.s32.totalorder %s17, 3
      %p123 = pnand %p121, %p122
      %p124 = pneg %p123
      // Predicated region
      $region9: #{tpu_custom_call.1} parent=5 // pred_check
        _
      $region10: #{tpu_custom_call.1} parent=5 // pred_check_branch
        %126 = sbr.rel (%p123) target = $region12
      $region11: #{tpu_custom_call.1} parent=5 // pred_region
        %s127 = ssub.s32 %s17, 1
      $region12: #{tpu_custom_call.1} parent=5 // pred_fallthru
        _
      %p128 = scmp.lt.s32.totalorder %s17, 2
      // Predicated region
      $region13: #{tpu_custom_call.1} parent=5 // pred_check
        %p129 = pneg %p128
      $region14: #{tpu_custom_call.1} parent=5 // pred_check_branch
        %131 = sbr.rel (%p129) target = $region16
      $region15: #{tpu_custom_call.1} parent=5 // pred_region
        // Predicated region
        $region17: #{tpu_custom_call.1} parent=15 // pred_check
          %p132 = pneg %p51
        $region18: #{tpu_custom_call.1} parent=15 // pred_check_branch
          %134 = sbr.rel (%p132) target = $region20
        $region19: #{tpu_custom_call.1} parent=15 // pred_region
          %s135 = sand.u32 %s41, 1
          %s136 = scalar_lea.sflag [#allocation3], %s135
          %s137 = sand.u32 %s41, 1
          %s138 = smul.addr %s137, 12
          %s139 = scalar_lea.vmem [#allocation2], %s138
          %141 = vsyncadd %s136, 0
          %s142 = smul.addr %s24, 3
          %s143 = sadd.s32 %s25, %s142
          %s144 = smul.addr %s143, 4
          %s145 = scalar_lea.hbm %s0, %s144
          %s146 = sshll.u32 %s145, 4
          %s147 = int_to_ptr.hbm [resolvable:$true] %s146
          %s148 = sshll.u32 %s139, 4
          %s149 = int_to_ptr.vmem [resolvable:$true] %s148
          %154 = dma.hbm_to_vmem [thread:$0]  %s147, 192, %s149, %s136, 64, 64, 4
        $region20: #{tpu_custom_call.1} parent=15 // pred_fallthru
          _
        // Predicated region
        $region21: #{tpu_custom_call.1} parent=15 // pred_check
          %p155 = pneg %p79
        $region22: #{tpu_custom_call.1} parent=15 // pred_check_branch
          %157 = sbr.rel (%p155) target = $region24
        $region23: #{tpu_custom_call.1} parent=15 // pred_region
          %s158 = sand.u32 %s69, 1
          %s159 = scalar_lea.sflag [#allocation6], %s158
          %s160 = sand.u32 %s69, 1
          %s161 = scalar_lea.vmem [#allocation5], %s160
          %163 = vsyncadd %s159, 0
          %s164 = sadd.s32 %s25, %s24
          %s165 = scalar_lea.hbm %s1, %s164
          %s167 = sshll.u32 %s165, 4
          %s168 = int_to_ptr.hbm [resolvable:$true] %s167
          %s169 = sshll.u32 %s161, 4
          %s170 = int_to_ptr.vmem [resolvable:$true] %s169
          %172 = dma.hbm_to_vmem [thread:$0]  %s168, 16, %s170, %s159
        $region24: #{tpu_custom_call.1} parent=15 // pred_fallthru
          _
      $region16: #{tpu_custom_call.1} parent=5 // pred_fallthru
        _
      %p173 = scmp.le.s32.totalorder 1, %s17
      %p174 = scmp.lt.s32.totalorder %s17, 3
      %p175 = pnand %p173, %p174
      %p176 = pneg %p175
      // Predicated region
      $region25: #{tpu_custom_call.1} parent=5 // pred_check
        _
      $region26: #{tpu_custom_call.1} parent=5 // pred_check_branch
        %178 = sbr.rel (%p175) target = $region28
      $region27: #{tpu_custom_call.1} parent=5 // pred_region
        %s179 = ssub.s32 %s17, 1
        %s180 = sand.u32 %s44, 1
        %s181 = scalar_lea.sflag [#allocation3], %s180
        %s182 = sand.u32 %s44, 1
        %s183 = smul.addr %s182, 12
        %s184 = scalar_lea.vmem [#allocation2], %s183
        // Predicated region
        $region29: #{tpu_custom_call.1} parent=27 // pred_check
          %p185 = pneg %p57
        $region30: #{tpu_custom_call.1} parent=27 // pred_check_branch
          %187 = sbr.rel (%p185) target = $region32
        $region31: #{tpu_custom_call.1} parent=27 // pred_region
          %189 = dma.done %s181, 192
        $region32: #{tpu_custom_call.1} parent=27 // pred_fallthru
          _
        %s190 = sand.u32 %s72, 1
        %s191 = scalar_lea.sflag [#allocation6], %s190
        %s192 = sand.u32 %s72, 1
        %s193 = scalar_lea.vmem [#allocation5], %s192
        // Predicated region
        $region33: #{tpu_custom_call.1} parent=27 // pred_check
          %p194 = pneg %p85
        $region34: #{tpu_custom_call.1} parent=27 // pred_check_branch
          %196 = sbr.rel (%p194) target = $region36
        $region35: #{tpu_custom_call.1} parent=27 // pred_region
          %198 = dma.done %s191, 16
        $region36: #{tpu_custom_call.1} parent=27 // pred_fallthru
          _
        %s199 = sand.u32 %s44, 1
        %s200 = scalar_lea.sflag [#allocation3], %s199
        %s201 = sand.u32 %s44, 1
        %s202 = smul.addr %s201, 12
        %s203 = scalar_lea.vmem [#allocation2], %s202
        %p204 = pneg %p57
        %p205 = pneg %p54
        %s206 = sand.u32 %s72, 1
        %s207 = scalar_lea.sflag [#allocation6], %s206
        %s208 = sand.u32 %s72, 1
        %s209 = scalar_lea.vmem [#allocation5], %s208
        %p210 = pneg %p85
        %p211 = pneg %p82
        %p212 = pneg %p113
        %p213 = pneg %p110
        %s214 = sand.u32 %s100, 1
        %s215 = scalar_lea.sflag [#allocation4], %s214
        %s216 = sand.u32 %s100, 1
        %s217 = scalar_lea.vmem [#allocation7], %s216
        %v218 = vld [vmem:[%s184] sm:$0xf]
        %s219 = scalar_lea.vmem %s184, 4 [#allocation2]
        %v220 = vld [vmem:[%s219] sm:$0xf]
        %s221 = scalar_lea.vmem %s184, 8 [#allocation2]
        %v222 = vld [vmem:[%s221] sm:$0xf]
        %v223 = vmax.f32 %v222, -7.0
        %v224 = vld [vmem:[%s193] sm:$0x1]
        %v225 = vmul.f32 %v223, -2.0
        %v226 = vmul.f32 %v225, 1.442695
        %v227 = vpow.pop %v226
        %v229 = vperm.slane %v224, 0
        %v231 = vsub.f32 %v229, %v220
        %v232 = vsub.f32 %v218, %v223
        %v233 = vsub.f32 %v232, 0.9189385
        %v234 = vmul.f32 %v231, %v231
        %v235 = vmul.f32 %v234, 0.5
        %v236 = vmul.f32 %v235, %v227
        %v237 = vsub.f32 %v233, %v236
        %vm238 = vcmask 125952
        %v239 = vsel %vm238, %v218, -inf
        %v240 = vrot.slane %v239, 4
        %v241 = vmax.f32 %v239, %v240
        %v242 = vrot.slane %v241, 2
        %v243 = vmax.f32 %v241, %v242
        %v244 = vrot.slane %v243, 1
        %v245 = vmax.f32 %v243, %v244
        %v246 = vsub.f32 %v218, %v245
        %v247 = vmul.f32 %v246, 1.442695
        %v248 = vpow.pop %v247
        %v249 = vsel %vm238, %v248, 0.0
        %v250 = vrot.slane %v249, 4
        %v251 = vadd.f32 %v249, %v250
        %v252 = vrot.slane %v251, 2
        %v253 = vadd.f32 %v251, %v252
        %v254 = vrot.slane %v253, 1
        %v255 = vadd.f32 %v253, %v254
        %v256 = vlog2.pop %v255
        %v257 = vmul.f32 %v256, 0.6931472
        %v258 = vsub.f32 %v237, %v245
        %v259 = vmul.f32 %v258, 1.442695
        %v260 = vpow.pop %v259
        %v261 = vsel %vm238, %v260, 0.0
        %v262 = vrot.slane %v261, 4
        %v263 = vadd.f32 %v261, %v262
        %v264 = vrot.slane %v263, 2
        %v265 = vadd.f32 %v263, %v264
        %v266 = vrot.slane %v265, 1
        %v267 = vadd.f32 %v265, %v266
        %v268 = vlog2.pop %v267
        %v269 = vmul.f32 %v268, 0.6931472
        %v270 = vsub.f32 %v257, %v269
        %v271 = vlaneseq
        %v272 = vand.u32 %v271, 127
        %s273 = smul.u32 %s27, 16
        %s274 = ssub.s32 16, %s273
        %v275 = vstv %s274
        %vm276 = vcmp.lt.s32.totalorder %v272, %v275
        %v277 = vsel %vm276, %v270, 0.0
        %vm278 = vcmask 130048
        %v279 = vsel %vm278, %v277, 0.0
        %280 = vadd.xlane.f32.xlu0 %v279
        %v281 = vpop.xlane.xlu0 %280
        %282 = vst [vmem:[%s217] sm:$0x1] %v281
        %s283 = sand.u32 %s100, 1
        %s284 = scalar_lea.sflag [#allocation4], %s283
        %s285 = sand.u32 %s100, 1
        %s286 = scalar_lea.vmem [#allocation7], %s285
        // Predicated region
        $region37: #{tpu_custom_call.1} parent=27 // pred_check
          %p287 = pneg %p110
        $region38: #{tpu_custom_call.1} parent=27 // pred_check_branch
          %289 = sbr.rel (%p287) target = $region40
        $region39: #{tpu_custom_call.1} parent=27 // pred_region
          %291 = vsyncadd %s284, 0
          %s292 = sadd.s32 %s27, %s26
          %s293 = scalar_lea.hbm %s2, %s292
          %s295 = sshll.u32 %s286, 4
          %s296 = int_to_ptr.vmem [resolvable:$true] %s295
          %s297 = sshll.u32 %s293, 4
          %s298 = int_to_ptr.hbm [resolvable:$true] %s297
          %300 = dma.vmem_to_hbm [thread:$0]  %s296, 16, %s298, %s284
        $region40: #{tpu_custom_call.1} parent=27 // pred_fallthru
          _
      $region28: #{tpu_custom_call.1} parent=5 // pred_fallthru
        _
      %p301 = scmp.le.s32.totalorder 2, %s17
      // Predicated region
      $region41: #{tpu_custom_call.1} parent=5 // pred_check
        %p302 = pneg %p301
      $region42: #{tpu_custom_call.1} parent=5 // pred_check_branch
        %304 = sbr.rel (%p302) target = $region44
      $region43: #{tpu_custom_call.1} parent=5 // pred_region
        %s305 = ssub.s32 %s17, 2
        // Predicated region
        $region45: #{tpu_custom_call.1} parent=43 // pred_check
          %p306 = pneg %p116
        $region46: #{tpu_custom_call.1} parent=43 // pred_check_branch
          %308 = sbr.rel (%p306) target = $region48
        $region47: #{tpu_custom_call.1} parent=43 // pred_region
          %s309 = sand.u32 %s101, 1
          %s310 = scalar_lea.sflag [#allocation4], %s309
          %s311 = sand.u32 %s101, 1
          %s312 = scalar_lea.vmem [#allocation7], %s311
          %314 = dma.done %s310, 16
        $region48: #{tpu_custom_call.1} parent=43 // pred_fallthru
          _
      $region44: #{tpu_custom_call.1} parent=5 // pred_fallthru
        _
    $region6: #{tpu_custom_call.1} parent=1 // loop_footer
      %s21 = sadd.s32 1, %s17
    $region7: #{tpu_custom_call.1} parent=1 // loop_footer_branch
      %16 = sbr.rel target = $region3
    $region8: #{tpu_custom_call.1} parent=1 // loop_exit
      _
    %315 = vsyncpa [#allocation3], 1
    %s316 = scalar_lea.sflag [#allocation3], 1
    %317 = vsyncpa %s316, 1
    %318 = vsyncpa [#allocation6], 1
    %s319 = scalar_lea.sflag [#allocation6], 1
    %320 = vsyncpa %s319, 1
    %321 = vsyncpa [#allocation4], 1
    %s322 = scalar_lea.sflag [#allocation4], 1
    %323 = vsyncpa %s322, 1

</llo_original>
